<compile_context>
chip_gen: v7x
topology: tpu7x:2x2x1
jax: 0.10.0
libtpu: 0.0.40
codegen_flags: <defaults>
</compile_context>

<pallas_src>
import jax
import jax.numpy as jnp
from jax.experimental import pallas as pl
from jax.experimental.pallas import tpu as pltpu

EPS = 1e-5


# ----------------------------- Pallas kernels ------------------------------ #

def _gnn_block(adj_bf16, x,
               w1f, b1f, w2f, b2f,
               wf0t, wf1t, wf2t, bfc):
    """2x (GCNConv with folded BN -> ReLU), skip-concat, fc + ReLU.

    BatchNorm (eval) is already folded into (w1f, b1f) / (w2f, b2f).
    The skip-concat Linear is split by input blocks (wf0t/wf1t/wf2t) so no
    in-kernel concatenation is needed.  adj is bf16; A @ Y runs bf16 x bf16
    on the MXU with f32 accumulation.
    """
    h0 = x
    y1 = jnp.dot(h0, w1f, preferred_element_type=jnp.float32)
    z1 = jnp.dot(adj_bf16, y1.astype(jnp.bfloat16),
                 preferred_element_type=jnp.float32) + b1f
    h1 = jnp.maximum(z1, 0.0)

    y2 = jnp.dot(h1, w2f, preferred_element_type=jnp.float32)
    z2 = jnp.dot(adj_bf16, y2.astype(jnp.bfloat16),
                 preferred_element_type=jnp.float32) + b2f
    h2 = jnp.maximum(z2, 0.0)

    f = (jnp.dot(h0, wf0t, preferred_element_type=jnp.float32)
         + jnp.dot(h1, wf1t, preferred_element_type=jnp.float32)
         + jnp.dot(h2, wf2t, preferred_element_type=jnp.float32)
         + bfc)
    return jnp.maximum(f, 0.0)


def line_path_kernel(adj_ref, x_ref,
                     w1f_ref, b1f_ref, w2f_ref, b2f_ref,
                     wf0t_ref, wf1t_ref, wf2t_ref, bfc_ref,
                     l1t_ref, lb1_ref, l2t_ref, lb2_ref, l3t_ref, lb3_ref,
                     out_ref):
    """Fused line path: WireframeGNN -> fc_lines (Linear+ReLU, Linear+ReLU, Linear)."""
    feat = _gnn_block(adj_ref[...], x_ref[...],
                      w1f_ref[...], b1f_ref[...], w2f_ref[...], b2f_ref[...],
                      wf0t_ref[...], wf1t_ref[...], wf2t_ref[...], bfc_ref[...])
    h = jnp.maximum(
        jnp.dot(feat, l1t_ref[...], preferred_element_type=jnp.float32) + lb1_ref[...], 0.0)
    h = jnp.maximum(
        jnp.dot(h, l2t_ref[...], preferred_element_type=jnp.float32) + lb2_ref[...], 0.0)
    out_ref[...] = jnp.dot(h, l3t_ref[...], preferred_element_type=jnp.float32) + lb3_ref[...]


def junction_path_kernel(adj_ref, x_ref,
                         w1f_ref, b1f_ref, w2f_ref, b2f_ref,
                         wf0t_ref, wf1t_ref, wf2t_ref, bfc_ref,
                         j1t_ref, jb1_ref, j2t_ref, jb2_ref,
                         out_ref):
    """Fused junction path: WireframeGNN -> fc_junction (Linear+ReLU, Linear)."""
    feat = _gnn_block(adj_ref[...], x_ref[...],
                      w1f_ref[...], b1f_ref[...], w2f_ref[...], b2f_ref[...],
                      wf0t_ref[...], wf1t_ref[...], wf2t_ref[...], bfc_ref[...])
    h = jnp.maximum(
        jnp.dot(feat, j1t_ref[...], preferred_element_type=jnp.float32) + jb1_ref[...], 0.0)
    out_ref[...] = jnp.dot(h, j2t_ref[...], preferred_element_type=jnp.float32) + jb2_ref[...]


# ----------------------------- pallas_call wrappers ------------------------ #

def _full_spec(shape):
    nd = len(shape)
    return pl.BlockSpec(shape, lambda i, nd=nd: (0,) * nd)


def _call(kernel, args, out_shape, flops):
    bytes_accessed = int(sum(int(a.size) * a.dtype.itemsize for a in args)
                         + out_shape[0] * out_shape[1] * 4)
    return pl.pallas_call(
        kernel,
        grid=(1,),
        in_specs=[_full_spec(a.shape) for a in args],
        out_specs=_full_spec(out_shape),
        out_shape=jax.ShapeDtypeStruct(out_shape, jnp.float32),
        compiler_params=pltpu.CompilerParams(dimension_semantics=("arbitrary",)),
        cost_estimate=pl.CostEstimate(flops=int(flops), transcendentals=0,
                                      bytes_accessed=bytes_accessed),
    )(*args)


def _fused_flops(N, F, H1, H2, head_dims):
    # 2 GCN layers (feature transform + adjacency matmul) + skip-concat fc + MLP head.
    flops = 2 * N * (F * H1 + N * H1 + H1 * H2 + N * H2 + (F + H1 + H2) * F)
    d = F
    for h in head_dims:
        flops += 2 * N * d * h
        d = h
    return flops


def run_line_path(adj_bf16, x, gp, lp):
    N, F = x.shape
    H1, H2 = gp["w1f"].shape[1], gp["w2f"].shape[1]
    head = (lp["w1t"].shape[1], lp["w2t"].shape[1], lp["w3t"].shape[1])
    args = (adj_bf16, x,
            gp["w1f"], gp["b1f"], gp["w2f"], gp["b2f"],
            gp["wf0t"], gp["wf1t"], gp["wf2t"], gp["bfc"],
            lp["w1t"], lp["b1"], lp["w2t"], lp["b2"], lp["w3t"], lp["b3"])
    return _call(line_path_kernel, args, (N, head[-1]),
                 _fused_flops(N, F, H1, H2, head))


def run_junction_path(adj_bf16, x, gp, jp):
    N, F = x.shape
    H1, H2 = gp["w1f"].shape[1], gp["w2f"].shape[1]
    head = (jp["w1t"].shape[1], jp["w2t"].shape[1])
    args = (adj_bf16, x,
            gp["w1f"], gp["b1f"], gp["w2f"], gp["b2f"],
            gp["wf0t"], gp["wf1t"], gp["wf2t"], gp["bfc"],
            jp["w1t"], jp["b1"], jp["w2t"], jp["b2"])
    return _call(junction_path_kernel, args, (N, head[-1]),
                 _fused_flops(N, F, H1, H2, head))


# ----------------------------- graph glue (plain JAX) ---------------------- #

def _normalized_adj(A):
    # GCNConv normalization with self-loops: D^-1/2 (A + I) D^-1/2
    N = A.shape[0]
    A_hat = A + jnp.eye(N, dtype=A.dtype)
    deg = A_hat.sum(axis=1)
    dinv = jax.lax.rsqrt(deg)
    return dinv[:, None] * A_hat * dinv[None, :]


def junction_adjacency(line2junction_idx, num_junctions):
    # make_unidirectional: bidirectional junction-junction edges, coalesced (deduped).
    J = num_junctions
    A = jnp.zeros((J, J), jnp.float32)
    A = A.at[line2junction_idx[:, 0], line2junction_idx[:, 1]].set(1.0)
    A = A.at[line2junction_idx[:, 1], line2junction_idx[:, 0]].set(1.0)
    A = A * (1.0 - jnp.eye(J, dtype=jnp.float32))
    return _normalized_adj(A)


def line_graph_adjacency(line2junction_idx, num_lines, num_junctions):
    # torch_convert_to_line_graph_edge_idx: line-graph nodes == lines; two lines are
    # connected iff they share a junction (self-connections excluded).  Implemented
    # via the L x J incidence matrix so the pairwise test is an MXU matmul.
    # TODO(synk): PyG LineGraph/coalesce edge bookkeeping is replicated as a dense
    # shared-junction adjacency rather than sparse edge_index manipulation.
    e = line2junction_idx
    inc = (jax.nn.one_hot(e[:, 0], num_junctions, dtype=jnp.float32)
           + jax.nn.one_hot(e[:, 1], num_junctions, dtype=jnp.float32))
    share = jnp.dot(inc, inc.T) > 0.0
    A = share.astype(jnp.float32) * (1.0 - jnp.eye(num_lines, dtype=jnp.float32))
    return _normalized_adj(A)


# ----------------------------- parameter init / prep ----------------------- #

def init_linear(key, in_dim, out_dim):
    kw, kb = jax.random.split(key)
    wt = 0.1 * jax.random.normal(kw, (in_dim, out_dim), jnp.float32)   # W^T
    b = 0.1 * jax.random.normal(kb, (1, out_dim), jnp.float32)
    return wt, b


def init_bn(key, dim):
    k1, k2, k3, k4 = jax.random.split(key, 4)
    g = 1.0 + 0.1 * jax.random.normal(k1, (1, dim), jnp.float32)
    be = 0.1 * jax.random.normal(k2, (1, dim), jnp.float32)
    m = 0.1 * jax.random.normal(k3, (1, dim), jnp.float32)
    v = 0.5 + jax.random.uniform(k4, (1, dim), jnp.float32)
    return g, be, m, v


def init_wireframe_gnn(key, feat_dim):
    H1, H2 = feat_dim // 2, feat_dim // 4
    keys = jax.random.split(key, 5)
    w1t, b1 = init_linear(keys[0], feat_dim, H1)
    g1, be1, m1, v1 = init_bn(keys[1], H1)
    w2t, b2 = init_linear(keys[2], H1, H2)
    g2, be2, m2, v2 = init_bn(keys[3], H2)
    # fc: Linear(feat_dim + H1 + H2, feat_dim); split along input dim
    wfct, bfc = init_linear(keys[4], feat_dim + H1 + H2, feat_dim)
    return dict(w1t=w1t, b1=b1, g1=g1, be1=be1, m1=m1, v1=v1,
                w2t=w2t, b2=b2, g2=g2, be2=be2, m2=m2, v2=v2,
                wf0t=wfct[:feat_dim],
                wf1t=wfct[feat_dim:feat_dim + H1],
                wf2t=wfct[feat_dim + H1:],
                bfc=bfc)


def fold_gnn_params(p):
    """Fold eval-mode BatchNorm into the GCN weights/biases (numerically equivalent)."""
    s1 = p["g1"] * jax.lax.rsqrt(p["v1"] + EPS)   # (1, H1)
    s2 = p["g2"] * jax.lax.rsqrt(p["v2"] + EPS)   # (1, H2)
    return dict(
        w1f=p["w1t"] * s1,
        b1f=(p["b1"] - p["m1"]) * s1 + p["be1"],
        w2f=p["w2t"] * s2,
        b2f=(p["b2"] - p["m2"]) * s2 + p["be2"],
        wf0t=p["wf0t"], wf1t=p["wf1t"], wf2t=p["wf2t"], bfc=p["bfc"],
    )


def init_fc_lines(key, in_dim, dim_fc, n_labels):
    k1, k2, k3 = jax.random.split(key, 3)
    w1t, b1 = init_linear(k1, in_dim, dim_fc)
    w2t, b2 = init_linear(k2, dim_fc, dim_fc)
    w3t, b3 = init_linear(k3, dim_fc, n_labels)
    return dict(w1t=w1t, b1=b1, w2t=w2t, b2=b2, w3t=w3t, b3=b3)


def init_fc_junction(key, num_feats, n_labels):
    m = num_feats // 4
    k1, k2 = jax.random.split(key)
    w1t, b1 = init_linear(k1, num_feats, m)
    w2t, b2 = init_linear(k2, m, n_labels)
    return dict(w1t=w1t, b1=b1, w2t=w2t, b2=b2)


# ----------------------------- head forward -------------------------------- #

def wireframe_gnn_head_forward(line_features, junction_features, line2junction_idx,
                               junction_logits, line_logits, params):
    L = line_features.shape[0]
    J = junction_features.shape[0]

    # _line_forward: line-graph GNN + fc_lines, fused into one pallas_call.
    adj_line = line_graph_adjacency(line2junction_idx, L, J).astype(jnp.bfloat16)
    line_logits = run_line_path(adj_line, line_features,
                                params["line_gnn"], params["fc_lines"])

    # _junction_forward: junction GNN + fc_junction, fused into one pallas_call.
    adj_junc = junction_adjacency(line2junction_idx, J).astype(jnp.bfloat16)
    junction_logits = run_junction_path(adj_junc, junction_features,
                                        params["junction_gnn"], params["fc_junction"])

    return line_logits, junction_logits


# ----------------------------- main ---------------------------------------- #

if __name__ == "__main__":
    key = jax.random.PRNGKey(0)

    # synthetic config (module requires dim_loi * n_pts1 == dim_fc)
    DIM_LOI, N_PTS1 = 8, 4
    DIM_FC = DIM_LOI * N_PTS1      # 32
    NUM_FEATS = 32
    NBR_LINE_LABELS = 4
    NBR_JUNCTION_LABELS = 4
    L, J = 16, 12                  # num lines, num junctions

    keys = jax.random.split(key, 10)

    # inputs
    line_features = jax.random.normal(keys[0], (L, DIM_FC), jnp.float32)
    junction_features = jax.random.normal(keys[1], (J, NUM_FEATS), jnp.float32)
    j1 = jax.random.randint(keys[2], (L,), 0, J)
    off = jax.random.randint(keys[3], (L,), 1, J)
    line2junction_idx = jnp.stack([j1, (j1 + off) % J], axis=1).astype(jnp.int32)
    line_logits_in = jax.random.normal(keys[4], (L, NBR_LINE_LABELS), jnp.float32)
    junction_logits_in = jax.random.normal(keys[5], (J, NBR_JUNCTION_LABELS), jnp.float32)

    # parameters (BN folded into the GCN weights at prep time)
    params = dict(
        line_gnn=fold_gnn_params(init_wireframe_gnn(keys[6], DIM_FC)),
        junction_gnn=fold_gnn_params(init_wireframe_gnn(keys[7], NUM_FEATS)),
        fc_lines=init_fc_lines(keys[8], DIM_LOI * N_PTS1, DIM_FC, NBR_LINE_LABELS),
        fc_junction=init_fc_junction(keys[9], NUM_FEATS, NBR_JUNCTION_LABELS),
    )

    line_logits, junction_logits = wireframe_gnn_head_forward(
        line_features, junction_features, line2junction_idx,
        junction_logits_in, line_logits_in, params)

    jax.block_until_ready((line_logits, junction_logits))
    assert line_logits.shape == (L, NBR_LINE_LABELS)
    assert junction_logits.shape == (J, NBR_JUNCTION_LABELS)
    print("KERNEL_OK")
</pallas_src>

<mosaic_0001>
module attributes {stable_mosaic.version = 11 : i64} {
  func.func @line_path_kernel(%arg0: i32, %arg1: memref<16x16xbf16, #tpu.memory_space<vmem>>, %arg2: memref<16x32xf32, #tpu.memory_space<vmem>>, %arg3: memref<32x16xf32, #tpu.memory_space<vmem>>, %arg4: memref<1x16xf32, #tpu.memory_space<vmem>>, %arg5: memref<16x8xf32, #tpu.memory_space<vmem>>, %arg6: memref<1x8xf32, #tpu.memory_space<vmem>>, %arg7: memref<32x32xf32, #tpu.memory_space<vmem>>, %arg8: memref<16x32xf32, #tpu.memory_space<vmem>>, %arg9: memref<8x32xf32, #tpu.memory_space<vmem>>, %arg10: memref<1x32xf32, #tpu.memory_space<vmem>>, %arg11: memref<32x32xf32, #tpu.memory_space<vmem>>, %arg12: memref<1x32xf32, #tpu.memory_space<vmem>>, %arg13: memref<32x32xf32, #tpu.memory_space<vmem>>, %arg14: memref<1x32xf32, #tpu.memory_space<vmem>>, %arg15: memref<32x4xf32, #tpu.memory_space<vmem>>, %arg16: memref<1x4xf32, #tpu.memory_space<vmem>>, %arg17: memref<16x4xf32, #tpu.memory_space<vmem>>) attributes {dimension_semantics = [#tpu.dimension_semantics<arbitrary>], iteration_bounds = array<i64: 1>, scalar_prefetch = 0 : i64, scratch_operands = 0 : i64, tpu.core_type = #tpu.core_type<tc>, window_params = [{pipeline_mode = #tpu.pipeline_mode<synchronous>, transform_indices = @transform_0, window_bounds = array<i64: 16, 16>}, {pipeline_mode = #tpu.pipeline_mode<synchronous>, transform_indices = @transform_1, window_bounds = array<i64: 16, 32>}, {pipeline_mode = #tpu.pipeline_mode<synchronous>, transform_indices = @transform_2, window_bounds = array<i64: 32, 16>}, {pipeline_mode = #tpu.pipeline_mode<synchronous>, transform_indices = @transform_3, window_bounds = array<i64: 1, 16>}, {pipeline_mode = #tpu.pipeline_mode<synchronous>, transform_indices = @transform_4, window_bounds = array<i64: 16, 8>}, {pipeline_mode = #tpu.pipeline_mode<synchronous>, transform_indices = @transform_5, window_bounds = array<i64: 1, 8>}, {pipeline_mode = #tpu.pipeline_mode<synchronous>, transform_indices = @transform_6, window_bounds = array<i64: 32, 32>}, {pipeline_mode = #tpu.pipeline_mode<synchronous>, transform_indices = @transform_7, window_bounds = array<i64: 16, 32>}, {pipeline_mode = #tpu.pipeline_mode<synchronous>, transform_indices = @transform_8, window_bounds = array<i64: 8, 32>}, {pipeline_mode = #tpu.pipeline_mode<synchronous>, transform_indices = @transform_9, window_bounds = array<i64: 1, 32>}, {pipeline_mode = #tpu.pipeline_mode<synchronous>, transform_indices = @transform_10, window_bounds = array<i64: 32, 32>}, {pipeline_mode = #tpu.pipeline_mode<synchronous>, transform_indices = @transform_11, window_bounds = array<i64: 1, 32>}, {pipeline_mode = #tpu.pipeline_mode<synchronous>, transform_indices = @transform_12, window_bounds = array<i64: 32, 32>}, {pipeline_mode = #tpu.pipeline_mode<synchronous>, transform_indices = @transform_13, window_bounds = array<i64: 1, 32>}, {pipeline_mode = #tpu.pipeline_mode<synchronous>, transform_indices = @transform_14, window_bounds = array<i64: 32, 4>}, {pipeline_mode = #tpu.pipeline_mode<synchronous>, transform_indices = @transform_15, window_bounds = array<i64: 1, 4>}, {pipeline_mode = #tpu.pipeline_mode<synchronous>, transform_indices = @transform_16, window_bounds = array<i64: 16, 4>}]} {
    %c0 = arith.constant 0 : index
    %c0_0 = arith.constant 0 : index
    %0 = vector.load %arg1[%c0, %c0_0] : memref<16x16xbf16, #tpu.memory_space<vmem>>, vector<16x16xbf16>
    %c0_1 = arith.constant 0 : index
    %c0_2 = arith.constant 0 : index
    %1 = vector.load %arg2[%c0_1, %c0_2] : memref<16x32xf32, #tpu.memory_space<vmem>>, vector<16x32xf32>
    %c0_3 = arith.constant 0 : index
    %c0_4 = arith.constant 0 : index
    %2 = vector.load %arg3[%c0_3, %c0_4] : memref<32x16xf32, #tpu.memory_space<vmem>>, vector<32x16xf32>
    %c0_5 = arith.constant 0 : index
    %c0_6 = arith.constant 0 : index
    %3 = vector.load %arg4[%c0_5, %c0_6] : memref<1x16xf32, #tpu.memory_space<vmem>>, vector<1x16xf32>
    %c0_7 = arith.constant 0 : index
    %c0_8 = arith.constant 0 : index
    %4 = vector.load %arg5[%c0_7, %c0_8] : memref<16x8xf32, #tpu.memory_space<vmem>>, vector<16x8xf32>
    %c0_9 = arith.constant 0 : index
    %c0_10 = arith.constant 0 : index
    %5 = vector.load %arg6[%c0_9, %c0_10] : memref<1x8xf32, #tpu.memory_space<vmem>>, vector<1x8xf32>
    %c0_11 = arith.constant 0 : index
    %c0_12 = arith.constant 0 : index
    %6 = vector.load %arg7[%c0_11, %c0_12] : memref<32x32xf32, #tpu.memory_space<vmem>>, vector<32x32xf32>
    %c0_13 = arith.constant 0 : index
    %c0_14 = arith.constant 0 : index
    %7 = vector.load %arg8[%c0_13, %c0_14] : memref<16x32xf32, #tpu.memory_space<vmem>>, vector<16x32xf32>
    %c0_15 = arith.constant 0 : index
    %c0_16 = arith.constant 0 : index
    %8 = vector.load %arg9[%c0_15, %c0_16] : memref<8x32xf32, #tpu.memory_space<vmem>>, vector<8x32xf32>
    %c0_17 = arith.constant 0 : index
    %c0_18 = arith.constant 0 : index
    %9 = vector.load %arg10[%c0_17, %c0_18] : memref<1x32xf32, #tpu.memory_space<vmem>>, vector<1x32xf32>
    %cst = arith.constant dense<0.000000e+00> : vector<16x16xf32>
    %10 = tpu.matmul %1, %2, %cst {dimension_numbers = #tpu.dot_dimension_numbers<[1], [0], [0], [1], [0, 0, 1, 1], [], []>} : vector<16x32xf32>, vector<32x16xf32>, vector<16x16xf32> -> vector<16x16xf32>
    %11 = arith.truncf %10 : vector<16x16xf32> to vector<16x16xbf16>
    %cst_19 = arith.constant dense<0.000000e+00> : vector<16x16xf32>
    %12 = tpu.matmul %0, %11, %cst_19 {dimension_numbers = #tpu.dot_dimension_numbers<[1], [0], [0], [1], [0, 0, 1, 1], [], []>} : vector<16x16xbf16>, vector<16x16xbf16>, vector<16x16xf32> -> vector<16x16xf32>
    %13 = vector.broadcast %3 : vector<1x16xf32> to vector<16x16xf32>
    %14 = arith.addf %12, %13 : vector<16x16xf32>
    %cst_20 = arith.constant 0.000000e+00 : f32
    %15 = vector.broadcast %cst_20 : f32 to vector<16x16xf32>
    %16 = arith.maximumf %14, %15 : vector<16x16xf32>
    %cst_21 = arith.constant dense<0.000000e+00> : vector<16x8xf32>
    %17 = tpu.matmul %16, %4, %cst_21 {dimension_numbers = #tpu.dot_dimension_numbers<[1], [0], [0], [1], [0, 0, 1, 1], [], []>} : vector<16x16xf32>, vector<16x8xf32>, vector<16x8xf32> -> vector<16x8xf32>
    %18 = arith.truncf %17 : vector<16x8xf32> to vector<16x8xbf16>
    %cst_22 = arith.constant dense<0.000000e+00> : vector<16x8xf32>
    %19 = tpu.matmul %0, %18, %cst_22 {dimension_numbers = #tpu.dot_dimension_numbers<[1], [0], [0], [1], [0, 0, 1, 1], [], []>} : vector<16x16xbf16>, vector<16x8xbf16>, vector<16x8xf32> -> vector<16x8xf32>
    %20 = vector.broadcast %5 : vector<1x8xf32> to vector<16x8xf32>
    %21 = arith.addf %19, %20 : vector<16x8xf32>
    %cst_23 = arith.constant 0.000000e+00 : f32
    %22 = vector.broadcast %cst_23 : f32 to vector<16x8xf32>
    %23 = arith.maximumf %21, %22 : vector<16x8xf32>
    %cst_24 = arith.constant dense<0.000000e+00> : vector<16x32xf32>
    %24 = tpu.matmul %1, %6, %cst_24 {dimension_numbers = #tpu.dot_dimension_numbers<[1], [0], [0], [1], [0, 0, 1, 1], [], []>} : vector<16x32xf32>, vector<32x32xf32>, vector<16x32xf32> -> vector<16x32xf32>
    %cst_25 = arith.constant dense<0.000000e+00> : vector<16x32xf32>
    %25 = tpu.matmul %16, %7, %cst_25 {dimension_numbers = #tpu.dot_dimension_numbers<[1], [0], [0], [1], [0, 0, 1, 1], [], []>} : vector<16x16xf32>, vector<16x32xf32>, vector<16x32xf32> -> vector<16x32xf32>
    %26 = arith.addf %24, %25 : vector<16x32xf32>
    %cst_26 = arith.constant dense<0.000000e+00> : vector<16x32xf32>
    %27 = tpu.matmul %23, %8, %cst_26 {dimension_numbers = #tpu.dot_dimension_numbers<[1], [0], [0], [1], [0, 0, 1, 1], [], []>} : vector<16x8xf32>, vector<8x32xf32>, vector<16x32xf32> -> vector<16x32xf32>
    %28 = arith.addf %26, %27 : vector<16x32xf32>
    %29 = vector.broadcast %9 : vector<1x32xf32> to vector<16x32xf32>
    %30 = arith.addf %28, %29 : vector<16x32xf32>
    %cst_27 = arith.constant 0.000000e+00 : f32
    %31 = vector.broadcast %cst_27 : f32 to vector<16x32xf32>
    %32 = arith.maximumf %30, %31 : vector<16x32xf32>
    %c0_28 = arith.constant 0 : index
    %c0_29 = arith.constant 0 : index
    %33 = vector.load %arg11[%c0_28, %c0_29] : memref<32x32xf32, #tpu.memory_space<vmem>>, vector<32x32xf32>
    %cst_30 = arith.constant dense<0.000000e+00> : vector<16x32xf32>
    %34 = tpu.matmul %32, %33, %cst_30 {dimension_numbers = #tpu.dot_dimension_numbers<[1], [0], [0], [1], [0, 0, 1, 1], [], []>} : vector<16x32xf32>, vector<32x32xf32>, vector<16x32xf32> -> vector<16x32xf32>
    %c0_31 = arith.constant 0 : index
    %c0_32 = arith.constant 0 : index
    %35 = vector.load %arg12[%c0_31, %c0_32] : memref<1x32xf32, #tpu.memory_space<vmem>>, vector<1x32xf32>
    %36 = vector.broadcast %35 : vector<1x32xf32> to vector<16x32xf32>
    %37 = arith.addf %34, %36 : vector<16x32xf32>
    %cst_33 = arith.constant 0.000000e+00 : f32
    %38 = vector.broadcast %cst_33 : f32 to vector<16x32xf32>
    %39 = arith.maximumf %37, %38 : vector<16x32xf32>
    %c0_34 = arith.constant 0 : index
    %c0_35 = arith.constant 0 : index
    %40 = vector.load %arg13[%c0_34, %c0_35] : memref<32x32xf32, #tpu.memory_space<vmem>>, vector<32x32xf32>
    %cst_36 = arith.constant dense<0.000000e+00> : vector<16x32xf32>
    %41 = tpu.matmul %39, %40, %cst_36 {dimension_numbers = #tpu.dot_dimension_numbers<[1], [0], [0], [1], [0, 0, 1, 1], [], []>} : vector<16x32xf32>, vector<32x32xf32>, vector<16x32xf32> -> vector<16x32xf32>
    %c0_37 = arith.constant 0 : index
    %c0_38 = arith.constant 0 : index
    %42 = vector.load %arg14[%c0_37, %c0_38] : memref<1x32xf32, #tpu.memory_space<vmem>>, vector<1x32xf32>
    %43 = vector.broadcast %42 : vector<1x32xf32> to vector<16x32xf32>
    %44 = arith.addf %41, %43 : vector<16x32xf32>
    %cst_39 = arith.constant 0.000000e+00 : f32
    %45 = vector.broadcast %cst_39 : f32 to vector<16x32xf32>
    %46 = arith.maximumf %44, %45 : vector<16x32xf32>
    %c0_40 = arith.constant 0 : index
    %c0_41 = arith.constant 0 : index
    %47 = vector.load %arg15[%c0_40, %c0_41] : memref<32x4xf32, #tpu.memory_space<vmem>>, vector<32x4xf32>
    %cst_42 = arith.constant dense<0.000000e+00> : vector<16x4xf32>
    %48 = tpu.matmul %46, %47, %cst_42 {dimension_numbers = #tpu.dot_dimension_numbers<[1], [0], [0], [1], [0, 0, 1, 1], [], []>} : vector<16x32xf32>, vector<32x4xf32>, vector<16x4xf32> -> vector<16x4xf32>
    %c0_43 = arith.constant 0 : index
    %c0_44 = arith.constant 0 : index
    %49 = vector.load %arg16[%c0_43, %c0_44] : memref<1x4xf32, #tpu.memory_space<vmem>>, vector<1x4xf32>
    %50 = vector.broadcast %49 : vector<1x4xf32> to vector<16x4xf32>
    %51 = arith.addf %48, %50 : vector<16x4xf32>
    %c0_45 = arith.constant 0 : index
    %c0_46 = arith.constant 0 : index
    %52 = vector.load %arg17[%c0_45, %c0_46] : memref<16x4xf32, #tpu.memory_space<vmem>>, vector<16x4xf32>
    tpu.vector_store %arg17[%c0_45, %c0_46], %51 {strides = array<i32>} : memref<16x4xf32, #tpu.memory_space<vmem>>, vector<16x4xf32>,
    return
  }
  func.func @transform_0(%arg0: i32) -> (i32, i32) {
    %c0_i32 = arith.constant 0 : i32
    %c0_i32_0 = arith.constant 0 : i32
    %c0_i32_1 = arith.constant 0 : i32
    return %c0_i32, %c0_i32_0 : i32, i32
  }
  func.func @transform_1(%arg0: i32) -> (i32, i32) {
    %c0_i32 = arith.constant 0 : i32
    %c0_i32_0 = arith.constant 0 : i32
    %c0_i32_1 = arith.constant 0 : i32
    return %c0_i32, %c0_i32_0 : i32, i32
  }
  func.func @transform_2(%arg0: i32) -> (i32, i32) {
    %c0_i32 = arith.constant 0 : i32
    %c0_i32_0 = arith.constant 0 : i32
    %c0_i32_1 = arith.constant 0 : i32
    return %c0_i32, %c0_i32_0 : i32, i32
  }
  func.func @transform_3(%arg0: i32) -> (i32, i32) {
    %c0_i32 = arith.constant 0 : i32
    %c0_i32_0 = arith.constant 0 : i32
    %c0_i32_1 = arith.constant 0 : i32
    return %c0_i32, %c0_i32_0 : i32, i32
  }
  func.func @transform_4(%arg0: i32) -> (i32, i32) {
    %c0_i32 = arith.constant 0 : i32
    %c0_i32_0 = arith.constant 0 : i32
    %c0_i32_1 = arith.constant 0 : i32
    return %c0_i32, %c0_i32_0 : i32, i32
  }
  func.func @transform_5(%arg0: i32) -> (i32, i32) {
    %c0_i32 = arith.constant 0 : i32
    %c0_i32_0 = arith.constant 0 : i32
    %c0_i32_1 = arith.constant 0 : i32
    return %c0_i32, %c0_i32_0 : i32, i32
  }
  func.func @transform_6(%arg0: i32) -> (i32, i32) {
    %c0_i32 = arith.constant 0 : i32
    %c0_i32_0 = arith.constant 0 : i32
    %c0_i32_1 = arith.constant 0 : i32
    return %c0_i32, %c0_i32_0 : i32, i32
  }
  func.func @transform_7(%arg0: i32) -> (i32, i32) {
    %c0_i32 = arith.constant 0 : i32
    %c0_i32_0 = arith.constant 0 : i32
    %c0_i32_1 = arith.constant 0 : i32
    return %c0_i32, %c0_i32_0 : i32, i32
  }
  func.func @transform_8(%arg0: i32) -> (i32, i32) {
    %c0_i32 = arith.constant 0 : i32
    %c0_i32_0 = arith.constant 0 : i32
    %c0_i32_1 = arith.constant 0 : i32
    return %c0_i32, %c0_i32_0 : i32, i32
  }
  func.func @transform_9(%arg0: i32) -> (i32, i32) {
    %c0_i32 = arith.constant 0 : i32
    %c0_i32_0 = arith.constant 0 : i32
    %c0_i32_1 = arith.constant 0 : i32
    return %c0_i32, %c0_i32_0 : i32, i32
  }
  func.func @transform_10(%arg0: i32) -> (i32, i32) {
    %c0_i32 = arith.constant 0 : i32
    %c0_i32_0 = arith.constant 0 : i32
    %c0_i32_1 = arith.constant 0 : i32
    return %c0_i32, %c0_i32_0 : i32, i32
  }
  func.func @transform_11(%arg0: i32) -> (i32, i32) {
    %c0_i32 = arith.constant 0 : i32
    %c0_i32_0 = arith.constant 0 : i32
    %c0_i32_1 = arith.constant 0 : i32
    return %c0_i32, %c0_i32_0 : i32, i32
  }
  func.func @transform_12(%arg0: i32) -> (i32, i32) {
    %c0_i32 = arith.constant 0 : i32
    %c0_i32_0 = arith.constant 0 : i32
    %c0_i32_1 = arith.constant 0 : i32
    return %c0_i32, %c0_i32_0 : i32, i32
  }
  func.func @transform_13(%arg0: i32) -> (i32, i32) {
    %c0_i32 = arith.constant 0 : i32
    %c0_i32_0 = arith.constant 0 : i32
    %c0_i32_1 = arith.constant 0 : i32
    return %c0_i32, %c0_i32_0 : i32, i32
  }
  func.func @transform_14(%arg0: i32) -> (i32, i32) {
    %c0_i32 = arith.constant 0 : i32
    %c0_i32_0 = arith.constant 0 : i32
    %c0_i32_1 = arith.constant 0 : i32
    return %c0_i32, %c0_i32_0 : i32, i32
  }
  func.func @transform_15(%arg0: i32) -> (i32, i32) {
    %c0_i32 = arith.constant 0 : i32
    %c0_i32_0 = arith.constant 0 : i32
    %c0_i32_1 = arith.constant 0 : i32
    return %c0_i32, %c0_i32_0 : i32, i32
  }
  func.func @transform_16(%arg0: i32) -> (i32, i32) {
    %c0_i32 = arith.constant 0 : i32
    %c0_i32_0 = arith.constant 0 : i32
    %c0_i32_1 = arith.constant 0 : i32
    return %c0_i32, %c0_i32_0 : i32, i32
  }
}

</mosaic_0001>

<llo_original>
// kernel: tpu_custom_call.1
$region0: #{tpu_custom_call.1}
  #allocation0 [shape = 'u32[]', space=smem, size = 0x4, offset = 0x4, fixed_abs, tag = 'smem constant byte address 0x4 - core index']
  #allocation1 [shape = 'u32[144,128]{1,0:T(1,128)}', space=vmem, size = 0x12000, scoped, tag = 'internal scratch']
  %s0 = inlined_call_operand.hbm [shape: bf16[16,16], index: 0, kind: input, shape index: {}]
  %s1 = inlined_call_operand.hbm [shape: f32[16,32], index: 1, kind: input, shape index: {}]
  %s2 = inlined_call_operand.vmem [shape: f32[32,16], index: 2, kind: input, shape index: {}]
  %s3 = inlined_call_operand.vmem [shape: f32[1,16], index: 3, kind: input, shape index: {}]
  %s4 = inlined_call_operand.vmem [shape: f32[16,8], index: 4, kind: input, shape index: {}]
  %s5 = inlined_call_operand.vmem [shape: f32[1,8], index: 5, kind: input, shape index: {}]
  %s6 = inlined_call_operand.vmem [shape: f32[32,32], index: 6, kind: input, shape index: {}]
  %s7 = inlined_call_operand.vmem [shape: f32[16,32], index: 7, kind: input, shape index: {}]
  %s8 = inlined_call_operand.vmem [shape: f32[8,32], index: 8, kind: input, shape index: {}]
  %s9 = inlined_call_operand.hbm [shape: f32[1,32], index: 9, kind: input, shape index: {}]
  %s10 = inlined_call_operand.vmem [shape: f32[32,32], index: 10, kind: input, shape index: {}]
  %s11 = inlined_call_operand.vmem [shape: f32[1,32], index: 11, kind: input, shape index: {}]
  %s12 = inlined_call_operand.vmem [shape: f32[32,32], index: 12, kind: input, shape index: {}]
  %s13 = inlined_call_operand.vmem [shape: f32[1,32], index: 13, kind: input, shape index: {}]
  %s14 = inlined_call_operand.vmem [shape: f32[32,4], index: 14, kind: input, shape index: {}]
  %s15 = inlined_call_operand.vmem [shape: f32[1,4], index: 15, kind: input, shape index: {}]
  %s16 = inlined_call_operand.vmem [shape: f32[16,4], index: 16, kind: output, shape index: {}]
  %s17 = sld [smem:[#allocation0]]
  $region86: #{tpu_custom_call.1} parent=0
    _
  %s19 = ssub.s32 1, %s17
  %s20 = scalar_select 0, %s19, %s17
  $region1: #{tpu_custom_call.1} parent=0
    #allocation2 [shape = 'u8[4096]{0}', space=vmem, size = 0x1000, scoped, tag = 'input window, operand 0, single buffered']
    #allocation3 [shape = 's32[1]{0}', space=sflag, size = 0x4, scoped, tag = 'scoped memory for tpu_custom_call.1']
    #allocation4 [shape = 'u8[8192]{0}', space=vmem, size = 0x2000, scoped, tag = 'input window, operand 1, single buffered']
    #allocation5 [shape = 's32[1]{0}', space=sflag, size = 0x4, scoped, tag = 'scoped memory for tpu_custom_call.1']
    #allocation6 [shape = 'u8[512]{0}', space=vmem, size = 0x400, scoped, tag = 'input window, operand 9, single buffered']
    %21 = vsyncpa [#allocation3], 0
    %22 = vsyncpa [#allocation5], 0
    // Predicated region
    $region2: #{tpu_custom_call.1} parent=1 // pred_check
      _
    $region3: #{tpu_custom_call.1} parent=1 // pred_check_branch
      %24 = sbr.rel (0) target = $region5
    $region4: #{tpu_custom_call.1} parent=1 // pred_region
      %s26 = ssub.s32 128, 128
      %27 = vsyncadd [#allocation3], %s26
      %s28 = sshll.u32 [#allocation2], 4
      %s29 = int_to_ptr.vmem [resolvable:$true] %s28
      %34 = dma.hbm_to_vmem [thread:$0]  %s0, 128, %s29, [#allocation3], 64, 64, 4
    $region5: #{tpu_custom_call.1} parent=1 // pred_fallthru
      _
    // Predicated region
    $region6: #{tpu_custom_call.1} parent=1 // pred_check
      _
    $region7: #{tpu_custom_call.1} parent=1 // pred_check_branch
      %36 = sbr.rel (0) target = $region9
    $region8: #{tpu_custom_call.1} parent=1 // pred_region
      %s38 = ssub.s32 256, 256
      %39 = vsyncadd [#allocation5], %s38
      %s40 = sshll.u32 [#allocation4], 4
      %s41 = int_to_ptr.vmem [resolvable:$true] %s40
      %46 = dma.hbm_to_vmem [thread:$0]  %s1, 256, %s41, [#allocation5], 128, 128, 8
    $region9: #{tpu_custom_call.1} parent=1 // pred_fallthru
      _
    // Predicated region
    $region10: #{tpu_custom_call.1} parent=1 // pred_check
      _
    $region11: #{tpu_custom_call.1} parent=1 // pred_check_branch
      %48 = sbr.rel (0) target = $region13
    $region12: #{tpu_custom_call.1} parent=1 // pred_region
      _
    $region13: #{tpu_custom_call.1} parent=1 // pred_fallthru
      _
    // Predicated region
    $region14: #{tpu_custom_call.1} parent=1 // pred_check
      _
    $region15: #{tpu_custom_call.1} parent=1 // pred_check_branch
      %50 = sbr.rel (0) target = $region17
    $region16: #{tpu_custom_call.1} parent=1 // pred_region
      _
    $region17: #{tpu_custom_call.1} parent=1 // pred_fallthru
      _
    // Predicated region
    $region18: #{tpu_custom_call.1} parent=1 // pred_check
      _
    $region19: #{tpu_custom_call.1} parent=1 // pred_check_branch
      %52 = sbr.rel (0) target = $region21
    $region20: #{tpu_custom_call.1} parent=1 // pred_region
      _
    $region21: #{tpu_custom_call.1} parent=1 // pred_fallthru
      _
    // Predicated region
    $region22: #{tpu_custom_call.1} parent=1 // pred_check
      _
    $region23: #{tpu_custom_call.1} parent=1 // pred_check_branch
      %54 = sbr.rel (0) target = $region25
    $region24: #{tpu_custom_call.1} parent=1 // pred_region
      _
    $region25: #{tpu_custom_call.1} parent=1 // pred_fallthru
      _
    // Predicated region
    $region26: #{tpu_custom_call.1} parent=1 // pred_check
      _
    $region27: #{tpu_custom_call.1} parent=1 // pred_check_branch
      %56 = sbr.rel (0) target = $region29
    $region28: #{tpu_custom_call.1} parent=1 // pred_region
      _
    $region29: #{tpu_custom_call.1} parent=1 // pred_fallthru
      _
    // Predicated region
    $region30: #{tpu_custom_call.1} parent=1 // pred_check
      _
    $region31: #{tpu_custom_call.1} parent=1 // pred_check_branch
      %58 = sbr.rel (0) target = $region33
    $region32: #{tpu_custom_call.1} parent=1 // pred_region
      _
    $region33: #{tpu_custom_call.1} parent=1 // pred_fallthru
      _
    // Predicated region
    $region34: #{tpu_custom_call.1} parent=1 // pred_check
      _
    $region35: #{tpu_custom_call.1} parent=1 // pred_check_branch
      %60 = sbr.rel (0) target = $region37
    $region36: #{tpu_custom_call.1} parent=1 // pred_region
      _
    $region37: #{tpu_custom_call.1} parent=1 // pred_fallthru
      _
    // Predicated region
    $region38: #{tpu_custom_call.1} parent=1 // pred_check
      _
    $region39: #{tpu_custom_call.1} parent=1 // pred_check_branch
      %62 = sbr.rel (0) target = $region41
    $region40: #{tpu_custom_call.1} parent=1 // pred_region
      %s64 = ssub.s32 16, 16
      %65 = vsyncadd [#allocation5], %s64
      %s67 = sshll.u32 [#allocation6], 4
      %s68 = int_to_ptr.vmem [resolvable:$true] %s67
      %70 = dma.hbm_to_vmem [thread:$0]  %s9, 16, %s68, [#allocation5]
    $region41: #{tpu_custom_call.1} parent=1 // pred_fallthru
      _
    // Predicated region
    $region42: #{tpu_custom_call.1} parent=1 // pred_check
      _
    $region43: #{tpu_custom_call.1} parent=1 // pred_check_branch
      %72 = sbr.rel (0) target = $region45
    $region44: #{tpu_custom_call.1} parent=1 // pred_region
      _
    $region45: #{tpu_custom_call.1} parent=1 // pred_fallthru
      _
    // Predicated region
    $region46: #{tpu_custom_call.1} parent=1 // pred_check
      _
    $region47: #{tpu_custom_call.1} parent=1 // pred_check_branch
      %74 = sbr.rel (0) target = $region49
    $region48: #{tpu_custom_call.1} parent=1 // pred_region
      _
    $region49: #{tpu_custom_call.1} parent=1 // pred_fallthru
      _
    // Predicated region
    $region50: #{tpu_custom_call.1} parent=1 // pred_check
      _
    $region51: #{tpu_custom_call.1} parent=1 // pred_check_branch
      %76 = sbr.rel (0) target = $region53
    $region52: #{tpu_custom_call.1} parent=1 // pred_region
      _
    $region53: #{tpu_custom_call.1} parent=1 // pred_fallthru
      _
    // Predicated region
    $region54: #{tpu_custom_call.1} parent=1 // pred_check
      _
    $region55: #{tpu_custom_call.1} parent=1 // pred_check_branch
      %78 = sbr.rel (0) target = $region57
    $region56: #{tpu_custom_call.1} parent=1 // pred_region
      _
    $region57: #{tpu_custom_call.1} parent=1 // pred_fallthru
      _
    // Predicated region
    $region58: #{tpu_custom_call.1} parent=1 // pred_check
      _
    $region59: #{tpu_custom_call.1} parent=1 // pred_check_branch
      %80 = sbr.rel (0) target = $region61
    $region60: #{tpu_custom_call.1} parent=1 // pred_region
      _
    $region61: #{tpu_custom_call.1} parent=1 // pred_fallthru
      _
    // Predicated region
    $region62: #{tpu_custom_call.1} parent=1 // pred_check
      _
    $region63: #{tpu_custom_call.1} parent=1 // pred_check_branch
      %82 = sbr.rel (0) target = $region65
    $region64: #{tpu_custom_call.1} parent=1 // pred_region
      _
    $region65: #{tpu_custom_call.1} parent=1 // pred_fallthru
      _
    // Predicated region
    $region66: #{tpu_custom_call.1} parent=1 // pred_check
      _
    $region67: #{tpu_custom_call.1} parent=1 // pred_check_branch
      %84 = sbr.rel (0) target = $region69
    $region68: #{tpu_custom_call.1} parent=1 // pred_region
      %85 = dma.done [#allocation3], 128
    $region69: #{tpu_custom_call.1} parent=1 // pred_fallthru
      _
    // Predicated region
    $region70: #{tpu_custom_call.1} parent=1 // pred_check
      _
    $region71: #{tpu_custom_call.1} parent=1 // pred_check_branch
      %87 = sbr.rel (0) target = $region73
    $region72: #{tpu_custom_call.1} parent=1 // pred_region
      %88 = dma.done [#allocation5], 256
    $region73: #{tpu_custom_call.1} parent=1 // pred_fallthru
      _
    // Predicated region
    $region74: #{tpu_custom_call.1} parent=1 // pred_check
      _
    $region75: #{tpu_custom_call.1} parent=1 // pred_check_branch
      %90 = sbr.rel (0) target = $region77
    $region76: #{tpu_custom_call.1} parent=1 // pred_region
      %91 = dma.done [#allocation5], 16
    $region77: #{tpu_custom_call.1} parent=1 // pred_fallthru
      _
    %v93 = vld [vmem:[#allocation2] sm:$0xf]
    %v94 = vld [vmem:[#allocation2 + $0x4] sm:$0xf]
    %v95 = vld [vmem:[#allocation4] sm:$0xff]
    %v96 = vld [vmem:[#allocation4 + $0x8] sm:$0xff]
    %v97 = vld [vmem:[%s2] sm:$0xff]
    %v98 = vld [vmem:[%s2 + $0x8] sm:$0xff]
    %v99 = vld [vmem:[%s2 + $0x10] sm:$0xff]
    %v100 = vld [vmem:[%s2 + $0x18] sm:$0xff]
    %v101 = vld [vmem:[%s3] sm:$0x1]
    %v102 = vld [vmem:[%s4] sm:$0xff]
    %v103 = vld [vmem:[%s4 + $0x8] sm:$0xff]
    %v104 = vld [vmem:[%s5] sm:$0x1]
    %v105 = vld [vmem:[%s6] sm:$0xff]
    %v106 = vld [vmem:[%s6 + $0x8] sm:$0xff]
    %v107 = vld [vmem:[%s6 + $0x10] sm:$0xff]
    %v108 = vld [vmem:[%s6 + $0x18] sm:$0xff]
    %v109 = vld [vmem:[%s7] sm:$0xff]
    %v110 = vld [vmem:[%s7 + $0x8] sm:$0xff]
    %v111 = vld [vmem:[%s8] sm:$0xff]
    %v112 = vld [vmem:[#allocation6] sm:$0x1]
    %vm113 = vcmask 261120
    %v115 = vsel %vm113, %v95, 0
    %v118 = vsel %vm113, %v96, 0
    %120 = vmatprep.subr.mxu0 0.0
    %121 = vmatpush1.msra.mxu0 %v97
    %122 = vmatprep.subr.mxu0 0.0
    %123 = vmatpush1.msra.mxu0 %v98
    %124 = vmatprep.subr.mxu0 0.0
    %125 = vmatpush1.msra.mxu0 %v99
    %126 = vmatprep.subr.mxu0 0.0
    %127 = vmatpush1.msra.mxu0 %v100
    %128 = vmatprep.subr.mxu0 0.0
    %129 = vmatpush1.msra.mxu0 0.0
    %130 = vmatprep.subr.mxu0 0.0
    %131 = vmatpush1.msra.mxu0 0.0
    %132 = vmatprep.subr.mxu0 0.0
    %133 = vmatpush1.msra.mxu0 0.0
    %134 = vmatprep.subr.mxu0 0.0
    %135 = vmatpush1.msra.mxu0 0.0
    %136 = vmatprep.subr.mxu0 0.0
    %137 = vmatpush1.msra.mxu0 0.0
    %138 = vmatprep.subr.mxu0 0.0
    %139 = vmatpush1.msra.mxu0 0.0
    %140 = vmatprep.subr.mxu0 0.0
    %141 = vmatpush1.msra.mxu0 0.0
    %142 = vmatprep.subr.mxu0 0.0
    %143 = vmatpush1.msra.mxu0 0.0
    %144 = vmatprep.subr.mxu0 0.0
    %145 = vmatpush1.msra.mxu0 0.0
    %146 = vmatprep.subr.mxu0 0.0
    %147 = vmatpush1.msra.mxu0 0.0
    %148 = vmatprep.subr.mxu0 0.0
    %149 = vmatpush1.msra.mxu0 0.0
    %150 = vmatprep.subr.mxu0 0.0
    %151 = vmatpush1.msra.mxu0 0.0
    %152 = vmatprep.subr.mxu0 0.0
    %153 = vmatpush1.msra.mxu0 0.0
    %154 = vmatprep.subr.mxu0 0.0
    %155 = vmatpush1.msra.mxu0 0.0
    %156 = vmatprep.subr.mxu0 0.0
    %157 = vmatpush1.msra.mxu0 0.0
    %158 = vmatprep.subr.mxu0 0.0
    %159 = vmatpush1.msra.mxu0 0.0
    %160 = vmatprep.subr.mxu0 0.0
    %161 = vmatpush1.msra.mxu0 0.0
    %162 = vmatprep.subr.mxu0 0.0
    %163 = vmatpush1.msra.mxu0 0.0
    %164 = vmatprep.subr.mxu0 0.0
    %165 = vmatpush1.msra.mxu0 0.0
    %166 = vmatprep.subr.mxu0 0.0
    %167 = vmatpush1.msra.mxu0 0.0
    %168 = vmatprep.subr.mxu0 0.0
    %169 = vmatpush1.msra.mxu0 0.0
    %170 = vmatprep.subr.mxu0 0.0
    %171 = vmatpush1.msra.mxu0 0.0
    %172 = vmatprep.subr.mxu0 0.0
    %173 = vmatpush1.msra.mxu0 0.0
    %174 = vmatprep.subr.mxu0 0.0
    %175 = vmatpush1.msra.mxu0 0.0
    %176 = vmatprep.subr.mxu0 0.0
    %177 = vmatpush1.msra.mxu0 0.0
    %178 = vmatprep.subr.mxu0 0.0
    %179 = vmatpush1.msra.mxu0 0.0
    %180 = vmatprep.subr.mxu0 0.0
    %181 = vmatpush1.msra.mxu0 0.0
    %182 = vmatprep.subr.mxu0 0.0
    %183 = vmatpush1.msra.mxu0 0.0
    %184 = vmatprep.mubr.f32.mxu0 0.0
    %185 = vmatmul.mubr.f32.gmra.mrb[0].mxu0 %v115
    %v186 = vpop.f32.mrb[0].mxu0
    %v187 = vadd.f32 0.0, %v186
    %v188 = vpop.f32.mrb[0].mxu0
    %189 = vmatprep.mubr.f32.mxu0 0.0
    %190 = vmatmul.mubr.f32.gmra.mrb[0].mxu0 %v118
    %v191 = vpop.f32.mrb[0].mxu0
    %v192 = vadd.f32 0.0, %v191
    %v193 = vpop.f32.mrb[0].mxu0
    %194 = vdwg.mxu0
    %v195 = vpack.c.bf16 %v192, %v187
    %v197 = vlaneseq
    %v198 = vshrl.u32 %v197, 7
    %v199 = vsub.s32 0, %v198
    %v200 = vrot.slane %v101, %v199
    %v204 = vunpack.c.l.b16 %v93
    %v205 = vunpack.c.l.b16 %v94
    %v206 = vpack.c.b16 %v205, %v204
    %vm207 = vcmask 130048
    %v209 = vsel %vm207, %v206, 0
    %211 = vmatprep.subr.bf16.mxu0 0
    %212 = vmatpush1.bf16.msra.mxu0 %v195
    %213 = vmatprep.subr.bf16.mxu0 0
    %214 = vmatpush1.bf16.msra.mxu0 0
    %215 = vmatprep.subr.bf16.mxu0 0
    %216 = vmatpush1.bf16.msra.mxu0 0
    %217 = vmatprep.subr.bf16.mxu0 0
    %218 = vmatpush1.bf16.msra.mxu0 0
    %219 = vmatprep.subr.bf16.mxu0 0
    %220 = vmatpush1.bf16.msra.mxu0 0
    %221 = vmatprep.subr.bf16.mxu0 0
    %222 = vmatpush1.bf16.msra.mxu0 0
    %223 = vmatprep.subr.bf16.mxu0 0
    %224 = vmatpush1.bf16.msra.mxu0 0
    %225 = vmatprep.subr.bf16.mxu0 0
    %226 = vmatpush1.bf16.msra.mxu0 0
    %227 = vmatprep.subr.bf16.mxu0 0
    %228 = vmatpush1.bf16.msra.mxu0 0
    %229 = vmatprep.subr.bf16.mxu0 0
    %230 = vmatpush1.bf16.msra.mxu0 0
    %231 = vmatprep.subr.bf16.mxu0 0
    %232 = vmatpush1.bf16.msra.mxu0 0
    %233 = vmatprep.subr.bf16.mxu0 0
    %234 = vmatpush1.bf16.msra.mxu0 0
    %235 = vmatprep.subr.bf16.mxu0 0
    %236 = vmatpush1.bf16.msra.mxu0 0
    %237 = vmatprep.subr.bf16.mxu0 0
    %238 = vmatpush1.bf16.msra.mxu0 0
    %239 = vmatprep.subr.bf16.mxu0 0
    %240 = vmatpush1.bf16.msra.mxu0 0
    %241 = vmatprep.subr.bf16.mxu0 0
    %242 = vmatpush1.bf16.msra.mxu0 0
    %243 = vmatprep.mubr.bf16.mxu0 0
    %244 = vmatmul.mubr.bf16.gmra.mrb[0].mxu0 %v209
    %v245 = vpop.f32.mrb[0].mxu0
    %v246 = vadd.f32 %v200, %v245
    %v247 = vpop.f32.mrb[0].mxu0
    %v248 = vpop.f32.mrb[0].mxu0
    %v249 = vadd.f32 %v200, %v248
    %v250 = vpop.f32.mrb[0].mxu0
    %251 = vdwg.mxu0
    %v252 = vmax.f32 %v246, 0.0
    %v253 = vmax.f32 %v249, 0.0
    %v255 = vsel %vm207, %v252, 0
    %v258 = vsel %vm207, %v253, 0
    %260 = vmatprep.subr.mxu0 0.0
    %261 = vmatpush1.msra.mxu0 %v102
    %262 = vmatprep.subr.mxu0 0.0
    %263 = vmatpush1.msra.mxu0 %v103
    %264 = vmatprep.subr.mxu0 0.0
    %265 = vmatpush1.msra.mxu0 0.0
    %266 = vmatprep.subr.mxu0 0.0
    %267 = vmatpush1.msra.mxu0 0.0
    %268 = vmatprep.subr.mxu0 0.0
    %269 = vmatpush1.msra.mxu0 0.0
    %270 = vmatprep.subr.mxu0 0.0
    %271 = vmatpush1.msra.mxu0 0.0
    %272 = vmatprep.subr.mxu0 0.0
    %273 = vmatpush1.msra.mxu0 0.0
    %274 = vmatprep.subr.mxu0 0.0
    %275 = vmatpush1.msra.mxu0 0.0
    %276 = vmatprep.subr.mxu0 0.0
    %277 = vmatpush1.msra.mxu0 0.0
    %278 = vmatprep.subr.mxu0 0.0
    %279 = vmatpush1.msra.mxu0 0.0
    %280 = vmatprep.subr.mxu0 0.0
    %281 = vmatpush1.msra.mxu0 0.0
    %282 = vmatprep.subr.mxu0 0.0
    %283 = vmatpush1.msra.mxu0 0.0
    %284 = vmatprep.subr.mxu0 0.0
    %285 = vmatpush1.msra.mxu0 0.0
    %286 = vmatprep.subr.mxu0 0.0
    %287 = vmatpush1.msra.mxu0 0.0
    %288 = vmatprep.subr.mxu0 0.0
    %289 = vmatpush1.msra.mxu0 0.0
    %290 = vmatprep.subr.mxu0 0.0
    %291 = vmatpush1.msra.mxu0 0.0
    %292 = vmatprep.subr.mxu0 0.0
    %293 = vmatpush1.msra.mxu0 0.0
    %294 = vmatprep.subr.mxu0 0.0
    %295 = vmatpush1.msra.mxu0 0.0
    %296 = vmatprep.subr.mxu0 0.0
    %297 = vmatpush1.msra.mxu0 0.0
    %298 = vmatprep.subr.mxu0 0.0
    %299 = vmatpush1.msra.mxu0 0.0
    %300 = vmatprep.subr.mxu0 0.0
    %301 = vmatpush1.msra.mxu0 0.0
    %302 = vmatprep.subr.mxu0 0.0
    %303 = vmatpush1.msra.mxu0 0.0
    %304 = vmatprep.subr.mxu0 0.0
    %305 = vmatpush1.msra.mxu0 0.0
    %306 = vmatprep.subr.mxu0 0.0
    %307 = vmatpush1.msra.mxu0 0.0
    %308 = vmatprep.subr.mxu0 0.0
    %309 = vmatpush1.msra.mxu0 0.0
    %310 = vmatprep.subr.mxu0 0.0
    %311 = vmatpush1.msra.mxu0 0.0
    %312 = vmatprep.subr.mxu0 0.0
    %313 = vmatpush1.msra.mxu0 0.0
    %314 = vmatprep.subr.mxu0 0.0
    %315 = vmatpush1.msra.mxu0 0.0
    %316 = vmatprep.subr.mxu0 0.0
    %317 = vmatpush1.msra.mxu0 0.0
    %318 = vmatprep.subr.mxu0 0.0
    %319 = vmatpush1.msra.mxu0 0.0
    %320 = vmatprep.subr.mxu0 0.0
    %321 = vmatpush1.msra.mxu0 0.0
    %322 = vmatprep.subr.mxu0 0.0
    %323 = vmatpush1.msra.mxu0 0.0
    %324 = vmatprep.mubr.f32.mxu0 0.0
    %325 = vmatmul.mubr.f32.gmra.mrb[0].mxu0 %v255
    %v326 = vpop.f32.mrb[0].mxu0
    %v327 = vadd.f32 0.0, %v326
    %v328 = vpop.f32.mrb[0].mxu0
    %329 = vmatprep.mubr.f32.mxu0 0.0
    %330 = vmatmul.mubr.f32.gmra.mrb[0].mxu0 %v258
    %v331 = vpop.f32.mrb[0].mxu0
    %v332 = vadd.f32 0.0, %v331
    %v333 = vpop.f32.mrb[0].mxu0
    %334 = vdwg.mxu0
    %v335 = vpack.c.bf16 %v332, %v327
    %v337 = vlaneseq
    %v338 = vshrl.u32 %v337, 7
    %v339 = vsub.s32 0, %v338
    %v340 = vrot.slane %v104, %v339
    %342 = vmatprep.subr.bf16.mxu0 0
    %343 = vmatpush1.bf16.msra.mxu0 %v335
    %344 = vmatprep.subr.bf16.mxu0 0
    %345 = vmatpush1.bf16.msra.mxu0 0
    %346 = vmatprep.subr.bf16.mxu0 0
    %347 = vmatpush1.bf16.msra.mxu0 0
    %348 = vmatprep.subr.bf16.mxu0 0
    %349 = vmatpush1.bf16.msra.mxu0 0
    %350 = vmatprep.subr.bf16.mxu0 0
    %351 = vmatpush1.bf16.msra.mxu0 0
    %352 = vmatprep.subr.bf16.mxu0 0
    %353 = vmatpush1.bf16.msra.mxu0 0
    %354 = vmatprep.subr.bf16.mxu0 0
    %355 = vmatpush1.bf16.msra.mxu0 0
    %356 = vmatprep.subr.bf16.mxu0 0
    %357 = vmatpush1.bf16.msra.mxu0 0
    %358 = vmatprep.subr.bf16.mxu0 0
    %359 = vmatpush1.bf16.msra.mxu0 0
    %360 = vmatprep.subr.bf16.mxu0 0
    %361 = vmatpush1.bf16.msra.mxu0 0
    %362 = vmatprep.subr.bf16.mxu0 0
    %363 = vmatpush1.bf16.msra.mxu0 0
    %364 = vmatprep.subr.bf16.mxu0 0
    %365 = vmatpush1.bf16.msra.mxu0 0
    %366 = vmatprep.subr.bf16.mxu0 0
    %367 = vmatpush1.bf16.msra.mxu0 0
    %368 = vmatprep.subr.bf16.mxu0 0
    %369 = vmatpush1.bf16.msra.mxu0 0
    %370 = vmatprep.subr.bf16.mxu0 0
    %371 = vmatpush1.bf16.msra.mxu0 0
    %372 = vmatprep.subr.bf16.mxu0 0
    %373 = vmatpush1.bf16.msra.mxu0 0
    %374 = vmatprep.mubr.bf16.mxu0 0
    %375 = vmatmul.mubr.bf16.gmra.mrb[0].mxu0 %v209
    %v376 = vpop.f32.mrb[0].mxu0
    %v377 = vadd.f32 %v340, %v376
    %v378 = vpop.f32.mrb[0].mxu0
    %v379 = vpop.f32.mrb[0].mxu0
    %v380 = vadd.f32 %v340, %v379
    %v381 = vpop.f32.mrb[0].mxu0
    %382 = vdwg.mxu0
    %v383 = vmax.f32 %v377, 0.0
    %v384 = vmax.f32 %v380, 0.0
    %385 = vmatprep.subr.mxu0 0.0
    %386 = vmatpush1.msra.mxu0 %v109
    %387 = vmatprep.subr.mxu0 0.0
    %388 = vmatpush1.msra.mxu0 %v110
    %389 = vmatprep.subr.mxu0 0.0
    %390 = vmatpush1.msra.mxu0 0.0
    %391 = vmatprep.subr.mxu0 0.0
    %392 = vmatpush1.msra.mxu0 0.0
    %393 = vmatprep.subr.mxu0 0.0
    %394 = vmatpush1.msra.mxu0 0.0
    %395 = vmatprep.subr.mxu0 0.0
    %396 = vmatpush1.msra.mxu0 0.0
    %397 = vmatprep.subr.mxu0 0.0
    %398 = vmatpush1.msra.mxu0 0.0
    %399 = vmatprep.subr.mxu0 0.0
    %400 = vmatpush1.msra.mxu0 0.0
    %401 = vmatprep.subr.mxu0 0.0
    %402 = vmatpush1.msra.mxu0 0.0
    %403 = vmatprep.subr.mxu0 0.0
    %404 = vmatpush1.msra.mxu0 0.0
    %405 = vmatprep.subr.mxu0 0.0
    %406 = vmatpush1.msra.mxu0 0.0
    %407 = vmatprep.subr.mxu0 0.0
    %408 = vmatpush1.msra.mxu0 0.0
    %409 = vmatprep.subr.mxu0 0.0
    %410 = vmatpush1.msra.mxu0 0.0
    %411 = vmatprep.subr.mxu0 0.0
    %412 = vmatpush1.msra.mxu0 0.0
    %413 = vmatprep.subr.mxu0 0.0
    %414 = vmatpush1.msra.mxu0 0.0
    %415 = vmatprep.subr.mxu0 0.0
    %416 = vmatpush1.msra.mxu0 0.0
    %417 = vmatprep.subr.mxu0 0.0
    %418 = vmatpush1.msra.mxu0 0.0
    %419 = vmatprep.subr.mxu0 0.0
    %420 = vmatpush1.msra.mxu0 0.0
    %421 = vmatprep.subr.mxu0 0.0
    %422 = vmatpush1.msra.mxu0 0.0
    %423 = vmatprep.subr.mxu0 0.0
    %424 = vmatpush1.msra.mxu0 0.0
    %425 = vmatprep.subr.mxu0 0.0
    %426 = vmatpush1.msra.mxu0 0.0
    %427 = vmatprep.subr.mxu0 0.0
    %428 = vmatpush1.msra.mxu0 0.0
    %429 = vmatprep.subr.mxu0 0.0
    %430 = vmatpush1.msra.mxu0 0.0
    %431 = vmatprep.subr.mxu0 0.0
    %432 = vmatpush1.msra.mxu0 0.0
    %433 = vmatprep.subr.mxu0 0.0
    %434 = vmatpush1.msra.mxu0 0.0
    %435 = vmatprep.subr.mxu0 0.0
    %436 = vmatpush1.msra.mxu0 0.0
    %437 = vmatprep.subr.mxu0 0.0
    %438 = vmatpush1.msra.mxu0 0.0
    %439 = vmatprep.subr.mxu0 0.0
    %440 = vmatpush1.msra.mxu0 0.0
    %441 = vmatprep.subr.mxu0 0.0
    %442 = vmatpush1.msra.mxu0 0.0
    %443 = vmatprep.subr.mxu0 0.0
    %444 = vmatpush1.msra.mxu0 0.0
    %445 = vmatprep.subr.mxu0 0.0
    %446 = vmatpush1.msra.mxu0 0.0
    %447 = vmatprep.subr.mxu0 0.0
    %448 = vmatpush1.msra.mxu0 0.0
    %449 = vmatprep.mubr.f32.mxu0 0.0
    %450 = vmatmul.mubr.f32.gmra.mrb[0].mxu0 %v255
    %v451 = vpop.f32.mrb[0].mxu0
    %v452 = vadd.f32 0.0, %v451
    %v453 = vpop.f32.mrb[0].mxu0
    %454 = vmatprep.mubr.f32.mxu0 0.0
    %455 = vmatmul.mubr.f32.gmra.mrb[0].mxu0 %v258
    %v456 = vpop.f32.mrb[0].mxu0
    %v457 = vadd.f32 0.0, %v456
    %v458 = vpop.f32.mrb[0].mxu0
    %459 = vdwg.mxu0
    %460 = vmatprep.subr.mxu0 0.0
    %461 = vmatpush1.msra.mxu0 %v105
    %462 = vmatprep.subr.mxu0 0.0
    %463 = vmatpush1.msra.mxu0 %v106
    %464 = vmatprep.subr.mxu0 0.0
    %465 = vmatpush1.msra.mxu0 %v107
    %466 = vmatprep.subr.mxu0 0.0
    %467 = vmatpush1.msra.mxu0 %v108
    %468 = vmatprep.subr.mxu0 0.0
    %469 = vmatpush1.msra.mxu0 0.0
    %470 = vmatprep.subr.mxu0 0.0
    %471 = vmatpush1.msra.mxu0 0.0
    %472 = vmatprep.subr.mxu0 0.0
    %473 = vmatpush1.msra.mxu0 0.0
    %474 = vmatprep.subr.mxu0 0.0
    %475 = vmatpush1.msra.mxu0 0.0
    %476 = vmatprep.subr.mxu0 0.0
    %477 = vmatpush1.msra.mxu0 0.0
    %478 = vmatprep.subr.mxu0 0.0
    %479 = vmatpush1.msra.mxu0 0.0
    %480 = vmatprep.subr.mxu0 0.0
    %481 = vmatpush1.msra.mxu0 0.0
    %482 = vmatprep.subr.mxu0 0.0
    %483 = vmatpush1.msra.mxu0 0.0
    %484 = vmatprep.subr.mxu0 0.0
    %485 = vmatpush1.msra.mxu0 0.0
    %486 = vmatprep.subr.mxu0 0.0
    %487 = vmatpush1.msra.mxu0 0.0
    %488 = vmatprep.subr.mxu0 0.0
    %489 = vmatpush1.msra.mxu0 0.0
    %490 = vmatprep.subr.mxu0 0.0
    %491 = vmatpush1.msra.mxu0 0.0
    %492 = vmatprep.subr.mxu0 0.0
    %493 = vmatpush1.msra.mxu0 0.0
    %494 = vmatprep.subr.mxu0 0.0
    %495 = vmatpush1.msra.mxu0 0.0
    %496 = vmatprep.subr.mxu0 0.0
    %497 = vmatpush1.msra.mxu0 0.0
    %498 = vmatprep.subr.mxu0 0.0
    %499 = vmatpush1.msra.mxu0 0.0
    %500 = vmatprep.subr.mxu0 0.0
    %501 = vmatpush1.msra.mxu0 0.0
    %502 = vmatprep.subr.mxu0 0.0
    %503 = vmatpush1.msra.mxu0 0.0
    %504 = vmatprep.subr.mxu0 0.0
    %505 = vmatpush1.msra.mxu0 0.0
    %506 = vmatprep.subr.mxu0 0.0
    %507 = vmatpush1.msra.mxu0 0.0
    %508 = vmatprep.subr.mxu0 0.0
    %509 = vmatpush1.msra.mxu0 0.0
    %510 = vmatprep.subr.mxu0 0.0
    %511 = vmatpush1.msra.mxu0 0.0
    %512 = vmatprep.subr.mxu0 0.0
    %513 = vmatpush1.msra.mxu0 0.0
    %514 = vmatprep.subr.mxu0 0.0
    %515 = vmatpush1.msra.mxu0 0.0
    %516 = vmatprep.subr.mxu0 0.0
    %517 = vmatpush1.msra.mxu0 0.0
    %518 = vmatprep.subr.mxu0 0.0
    %519 = vmatpush1.msra.mxu0 0.0
    %520 = vmatprep.subr.mxu0 0.0
    %521 = vmatpush1.msra.mxu0 0.0
    %522 = vmatprep.subr.mxu0 0.0
    %523 = vmatpush1.msra.mxu0 0.0
    %524 = vmatprep.mubr.f32.mxu0 0.0
    %525 = vmatmul.mubr.f32.gmra.mrb[0].mxu0 %v115
    %v526 = vpop.f32.mrb[0].mxu0
    %v527 = vadd.f32 %v452, %v526
    %v528 = vpop.f32.mrb[0].mxu0
    %529 = vmatprep.mubr.f32.mxu0 0.0
    %530 = vmatmul.mubr.f32.gmra.mrb[0].mxu0 %v118
    %v531 = vpop.f32.mrb[0].mxu0
    %v532 = vadd.f32 %v457, %v531
    %v533 = vpop.f32.mrb[0].mxu0
    %534 = vdwg.mxu0
    %vm535 = vcmask 64512
    %v537 = vsel %vm535, %v383, 0
    %v540 = vsel %vm535, %v384, 0
    %542 = vmatprep.subr.mxu0 0.0
    %543 = vmatpush1.msra.mxu0 %v111
    %544 = vmatprep.subr.mxu0 0.0
    %545 = vmatpush1.msra.mxu0 0.0
    %546 = vmatprep.subr.mxu0 0.0
    %547 = vmatpush1.msra.mxu0 0.0
    %548 = vmatprep.subr.mxu0 0.0
    %549 = vmatpush1.msra.mxu0 0.0
    %550 = vmatprep.subr.mxu0 0.0
    %551 = vmatpush1.msra.mxu0 0.0
    %552 = vmatprep.subr.mxu0 0.0
    %553 = vmatpush1.msra.mxu0 0.0
    %554 = vmatprep.subr.mxu0 0.0
    %555 = vmatpush1.msra.mxu0 0.0
    %556 = vmatprep.subr.mxu0 0.0
    %557 = vmatpush1.msra.mxu0 0.0
    %558 = vmatprep.subr.mxu0 0.0
    %559 = vmatpush1.msra.mxu0 0.0
    %560 = vmatprep.subr.mxu0 0.0
    %561 = vmatpush1.msra.mxu0 0.0
    %562 = vmatprep.subr.mxu0 0.0
    %563 = vmatpush1.msra.mxu0 0.0
    %564 = vmatprep.subr.mxu0 0.0
    %565 = vmatpush1.msra.mxu0 0.0
    %566 = vmatprep.subr.mxu0 0.0
    %567 = vmatpush1.msra.mxu0 0.0
    %568 = vmatprep.subr.mxu0 0.0
    %569 = vmatpush1.msra.mxu0 0.0
    %570 = vmatprep.subr.mxu0 0.0
    %571 = vmatpush1.msra.mxu0 0.0
    %572 = vmatprep.subr.mxu0 0.0
    %573 = vmatpush1.msra.mxu0 0.0
    %574 = vmatprep.subr.mxu0 0.0
    %575 = vmatpush1.msra.mxu0 0.0
    %576 = vmatprep.subr.mxu0 0.0
    %577 = vmatpush1.msra.mxu0 0.0
    %578 = vmatprep.subr.mxu0 0.0
    %579 = vmatpush1.msra.mxu0 0.0
    %580 = vmatprep.subr.mxu0 0.0
    %581 = vmatpush1.msra.mxu0 0.0
    %582 = vmatprep.subr.mxu0 0.0
    %583 = vmatpush1.msra.mxu0 0.0
    %584 = vmatprep.subr.mxu0 0.0
    %585 = vmatpush1.msra.mxu0 0.0
    %586 = vmatprep.subr.mxu0 0.0
    %587 = vmatpush1.msra.mxu0 0.0
    %588 = vmatprep.subr.mxu0 0.0
    %589 = vmatpush1.msra.mxu0 0.0
    %590 = vmatprep.subr.mxu0 0.0
    %591 = vmatpush1.msra.mxu0 0.0
    %592 = vmatprep.subr.mxu0 0.0
    %593 = vmatpush1.msra.mxu0 0.0
    %594 = vmatprep.subr.mxu0 0.0
    %595 = vmatpush1.msra.mxu0 0.0
    %596 = vmatprep.subr.mxu0 0.0
    %597 = vmatpush1.msra.mxu0 0.0
    %598 = vmatprep.subr.mxu0 0.0
    %599 = vmatpush1.msra.mxu0 0.0
    %600 = vmatprep.subr.mxu0 0.0
    %601 = vmatpush1.msra.mxu0 0.0
    %602 = vmatprep.subr.mxu0 0.0
    %603 = vmatpush1.msra.mxu0 0.0
    %604 = vmatprep.subr.mxu0 0.0
    %605 = vmatpush1.msra.mxu0 0.0
    %606 = vmatprep.mubr.f32.mxu0 0.0
    %607 = vmatmul.mubr.f32.gmra.mrb[0].mxu0 %v537
    %v608 = vpop.f32.mrb[0].mxu0
    %v609 = vadd.f32 0.0, %v608
    %v610 = vpop.f32.mrb[0].mxu0
    %611 = vmatprep.mubr.f32.mxu0 0.0
    %612 = vmatmul.mubr.f32.gmra.mrb[0].mxu0 %v540
    %v613 = vpop.f32.mrb[0].mxu0
    %v614 = vadd.f32 0.0, %v613
    %v615 = vpop.f32.mrb[0].mxu0
    %616 = vdwg.mxu0
    %v617 = vadd.f32 %v527, %v609
    %v618 = vadd.f32 %v532, %v614
    %v620 = vlaneseq
    %v621 = vshrl.u32 %v620, 7
    %v622 = vsub.s32 0, %v621
    %v623 = vrot.slane %v112, %v622
    %v625 = vadd.f32 %v617, %v623
    %v626 = vadd.f32 %v618, %v623
    %v627 = vmax.f32 %v625, 0.0
    %v628 = vmax.f32 %v626, 0.0
    %v629 = vld [vmem:[%s10] sm:$0xff]
    %v630 = vld [vmem:[%s10 + $0x8] sm:$0xff]
    %v631 = vld [vmem:[%s10 + $0x10] sm:$0xff]
    %v632 = vld [vmem:[%s10 + $0x18] sm:$0xff]
    %v633 = vld [vmem:[%s11] sm:$0x1]
    %v635 = vlaneseq
    %v636 = vshrl.u32 %v635, 7
    %v637 = vsub.s32 0, %v636
    %v638 = vrot.slane %v633, %v637
    %v641 = vsel %vm113, %v627, 0
    %v644 = vsel %vm113, %v628, 0
    %646 = vmatprep.subr.mxu0 0.0
    %647 = vmatpush1.msra.mxu0 %v629
    %648 = vmatprep.subr.mxu0 0.0
    %649 = vmatpush1.msra.mxu0 %v630
    %650 = vmatprep.subr.mxu0 0.0
    %651 = vmatpush1.msra.mxu0 %v631
    %652 = vmatprep.subr.mxu0 0.0
    %653 = vmatpush1.msra.mxu0 %v632
    %654 = vmatprep.subr.mxu0 0.0
    %655 = vmatpush1.msra.mxu0 0.0
    %656 = vmatprep.subr.mxu0 0.0
    %657 = vmatpush1.msra.mxu0 0.0
    %658 = vmatprep.subr.mxu0 0.0
    %659 = vmatpush1.msra.mxu0 0.0
    %660 = vmatprep.subr.mxu0 0.0
    %661 = vmatpush1.msra.mxu0 0.0
    %662 = vmatprep.subr.mxu0 0.0
    %663 = vmatpush1.msra.mxu0 0.0
    %664 = vmatprep.subr.mxu0 0.0
    %665 = vmatpush1.msra.mxu0 0.0
    %666 = vmatprep.subr.mxu0 0.0
    %667 = vmatpush1.msra.mxu0 0.0
    %668 = vmatprep.subr.mxu0 0.0
    %669 = vmatpush1.msra.mxu0 0.0
    %670 = vmatprep.subr.mxu0 0.0
    %671 = vmatpush1.msra.mxu0 0.0
    %672 = vmatprep.subr.mxu0 0.0
    %673 = vmatpush1.msra.mxu0 0.0
    %674 = vmatprep.subr.mxu0 0.0
    %675 = vmatpush1.msra.mxu0 0.0
    %676 = vmatprep.subr.mxu0 0.0
    %677 = vmatpush1.msra.mxu0 0.0
    %678 = vmatprep.subr.mxu0 0.0
    %679 = vmatpush1.msra.mxu0 0.0
    %680 = vmatprep.subr.mxu0 0.0
    %681 = vmatpush1.msra.mxu0 0.0
    %682 = vmatprep.subr.mxu0 0.0
    %683 = vmatpush1.msra.mxu0 0.0
    %684 = vmatprep.subr.mxu0 0.0
    %685 = vmatpush1.msra.mxu0 0.0
    %686 = vmatprep.subr.mxu0 0.0
    %687 = vmatpush1.msra.mxu0 0.0
    %688 = vmatprep.subr.mxu0 0.0
    %689 = vmatpush1.msra.mxu0 0.0
    %690 = vmatprep.subr.mxu0 0.0
    %691 = vmatpush1.msra.mxu0 0.0
    %692 = vmatprep.subr.mxu0 0.0
    %693 = vmatpush1.msra.mxu0 0.0
    %694 = vmatprep.subr.mxu0 0.0
    %695 = vmatpush1.msra.mxu0 0.0
    %696 = vmatprep.subr.mxu0 0.0
    %697 = vmatpush1.msra.mxu0 0.0
    %698 = vmatprep.subr.mxu0 0.0
    %699 = vmatpush1.msra.mxu0 0.0
    %700 = vmatprep.subr.mxu0 0.0
    %701 = vmatpush1.msra.mxu0 0.0
    %702 = vmatprep.subr.mxu0 0.0
    %703 = vmatpush1.msra.mxu0 0.0
    %704 = vmatprep.subr.mxu0 0.0
    %705 = vmatpush1.msra.mxu0 0.0
    %706 = vmatprep.subr.mxu0 0.0
    %707 = vmatpush1.msra.mxu0 0.0
    %708 = vmatprep.subr.mxu0 0.0
    %709 = vmatpush1.msra.mxu0 0.0
    %710 = vmatprep.mubr.f32.mxu0 0.0
    %711 = vmatmul.mubr.f32.gmra.mrb[0].mxu0 %v641
    %v712 = vpop.f32.mrb[0].mxu0
    %v713 = vadd.f32 %v638, %v712
    %v714 = vpop.f32.mrb[0].mxu0
    %715 = vmatprep.mubr.f32.mxu0 0.0
    %716 = vmatmul.mubr.f32.gmra.mrb[0].mxu0 %v644
    %v717 = vpop.f32.mrb[0].mxu0
    %v718 = vadd.f32 %v638, %v717
    %v719 = vpop.f32.mrb[0].mxu0
    %720 = vdwg.mxu0
    %v721 = vmax.f32 %v713, 0.0
    %v722 = vmax.f32 %v718, 0.0
    %v723 = vld [vmem:[%s12] sm:$0xff]
    %v724 = vld [vmem:[%s12 + $0x8] sm:$0xff]
    %v725 = vld [vmem:[%s12 + $0x10] sm:$0xff]
    %v726 = vld [vmem:[%s12 + $0x18] sm:$0xff]
    %v727 = vld [vmem:[%s13] sm:$0x1]
    %v729 = vlaneseq
    %v730 = vshrl.u32 %v729, 7
    %v731 = vsub.s32 0, %v730
    %v732 = vrot.slane %v727, %v731
    %v735 = vsel %vm113, %v721, 0
    %v738 = vsel %vm113, %v722, 0
    %740 = vmatprep.subr.mxu0 0.0
    %741 = vmatpush1.msra.mxu0 %v723
    %742 = vmatprep.subr.mxu0 0.0
    %743 = vmatpush1.msra.mxu0 %v724
    %744 = vmatprep.subr.mxu0 0.0
    %745 = vmatpush1.msra.mxu0 %v725
    %746 = vmatprep.subr.mxu0 0.0
    %747 = vmatpush1.msra.mxu0 %v726
    %748 = vmatprep.subr.mxu0 0.0
    %749 = vmatpush1.msra.mxu0 0.0
    %750 = vmatprep.subr.mxu0 0.0
    %751 = vmatpush1.msra.mxu0 0.0
    %752 = vmatprep.subr.mxu0 0.0
    %753 = vmatpush1.msra.mxu0 0.0
    %754 = vmatprep.subr.mxu0 0.0
    %755 = vmatpush1.msra.mxu0 0.0
    %756 = vmatprep.subr.mxu0 0.0
    %757 = vmatpush1.msra.mxu0 0.0
    %758 = vmatprep.subr.mxu0 0.0
    %759 = vmatpush1.msra.mxu0 0.0
    %760 = vmatprep.subr.mxu0 0.0
    %761 = vmatpush1.msra.mxu0 0.0
    %762 = vmatprep.subr.mxu0 0.0
    %763 = vmatpush1.msra.mxu0 0.0
    %764 = vmatprep.subr.mxu0 0.0
    %765 = vmatpush1.msra.mxu0 0.0
    %766 = vmatprep.subr.mxu0 0.0
    %767 = vmatpush1.msra.mxu0 0.0
    %768 = vmatprep.subr.mxu0 0.0
    %769 = vmatpush1.msra.mxu0 0.0
    %770 = vmatprep.subr.mxu0 0.0
    %771 = vmatpush1.msra.mxu0 0.0
    %772 = vmatprep.subr.mxu0 0.0
    %773 = vmatpush1.msra.mxu0 0.0
    %774 = vmatprep.subr.mxu0 0.0
    %775 = vmatpush1.msra.mxu0 0.0
    %776 = vmatprep.subr.mxu0 0.0
    %777 = vmatpush1.msra.mxu0 0.0
    %778 = vmatprep.subr.mxu0 0.0
    %779 = vmatpush1.msra.mxu0 0.0
    %780 = vmatprep.subr.mxu0 0.0
    %781 = vmatpush1.msra.mxu0 0.0
    %782 = vmatprep.subr.mxu0 0.0
    %783 = vmatpush1.msra.mxu0 0.0
    %784 = vmatprep.subr.mxu0 0.0
    %785 = vmatpush1.msra.mxu0 0.0
    %786 = vmatprep.subr.mxu0 0.0
    %787 = vmatpush1.msra.mxu0 0.0
    %788 = vmatprep.subr.mxu0 0.0
    %789 = vmatpush1.msra.mxu0 0.0
    %790 = vmatprep.subr.mxu0 0.0
    %791 = vmatpush1.msra.mxu0 0.0
    %792 = vmatprep.subr.mxu0 0.0
    %793 = vmatpush1.msra.mxu0 0.0
    %794 = vmatprep.subr.mxu0 0.0
    %795 = vmatpush1.msra.mxu0 0.0
    %796 = vmatprep.subr.mxu0 0.0
    %797 = vmatpush1.msra.mxu0 0.0
    %798 = vmatprep.subr.mxu0 0.0
    %799 = vmatpush1.msra.mxu0 0.0
    %800 = vmatprep.subr.mxu0 0.0
    %801 = vmatpush1.msra.mxu0 0.0
    %802 = vmatprep.subr.mxu0 0.0
    %803 = vmatpush1.msra.mxu0 0.0
    %804 = vmatprep.mubr.f32.mxu0 0.0
    %805 = vmatmul.mubr.f32.gmra.mrb[0].mxu0 %v735
    %v806 = vpop.f32.mrb[0].mxu0
    %v807 = vadd.f32 %v732, %v806
    %v808 = vpop.f32.mrb[0].mxu0
    %809 = vmatprep.mubr.f32.mxu0 0.0
    %810 = vmatmul.mubr.f32.gmra.mrb[0].mxu0 %v738
    %v811 = vpop.f32.mrb[0].mxu0
    %v812 = vadd.f32 %v732, %v811
    %v813 = vpop.f32.mrb[0].mxu0
    %814 = vdwg.mxu0
    %v815 = vmax.f32 %v807, 0.0
    %v816 = vmax.f32 %v812, 0.0
    %v817 = vld [vmem:[%s14] sm:$0xff]
    %v818 = vld [vmem:[%s14 + $0x8] sm:$0xff]
    %v819 = vld [vmem:[%s14 + $0x10] sm:$0xff]
    %v820 = vld [vmem:[%s14 + $0x18] sm:$0xff]
    %v821 = vld [vmem:[%s15] sm:$0x1]
    %v823 = vlaneseq
    %v824 = vshrl.u32 %v823, 7
    %v825 = vsub.s32 0, %v824
    %v826 = vrot.slane %v821, %v825
    %v829 = vsel %vm113, %v815, 0
    %v832 = vsel %vm113, %v816, 0
    %834 = vmatprep.subr.mxu0 0.0
    %835 = vmatpush1.msra.mxu0 %v817
    %836 = vmatprep.subr.mxu0 0.0
    %837 = vmatpush1.msra.mxu0 %v818
    %838 = vmatprep.subr.mxu0 0.0
    %839 = vmatpush1.msra.mxu0 %v819
    %840 = vmatprep.subr.mxu0 0.0
    %841 = vmatpush1.msra.mxu0 %v820
    %842 = vmatprep.subr.mxu0 0.0
    %843 = vmatpush1.msra.mxu0 0.0
    %844 = vmatprep.subr.mxu0 0.0
    %845 = vmatpush1.msra.mxu0 0.0
    %846 = vmatprep.subr.mxu0 0.0
    %847 = vmatpush1.msra.mxu0 0.0
    %848 = vmatprep.subr.mxu0 0.0
    %849 = vmatpush1.msra.mxu0 0.0
    %850 = vmatprep.subr.mxu0 0.0
    %851 = vmatpush1.msra.mxu0 0.0
    %852 = vmatprep.subr.mxu0 0.0
    %853 = vmatpush1.msra.mxu0 0.0
    %854 = vmatprep.subr.mxu0 0.0
    %855 = vmatpush1.msra.mxu0 0.0
    %856 = vmatprep.subr.mxu0 0.0
    %857 = vmatpush1.msra.mxu0 0.0
    %858 = vmatprep.subr.mxu0 0.0
    %859 = vmatpush1.msra.mxu0 0.0
    %860 = vmatprep.subr.mxu0 0.0
    %861 = vmatpush1.msra.mxu0 0.0
    %862 = vmatprep.subr.mxu0 0.0
    %863 = vmatpush1.msra.mxu0 0.0
    %864 = vmatprep.subr.mxu0 0.0
    %865 = vmatpush1.msra.mxu0 0.0
    %866 = vmatprep.subr.mxu0 0.0
    %867 = vmatpush1.msra.mxu0 0.0
    %868 = vmatprep.subr.mxu0 0.0
    %869 = vmatpush1.msra.mxu0 0.0
    %870 = vmatprep.subr.mxu0 0.0
    %871 = vmatpush1.msra.mxu0 0.0
    %872 = vmatprep.subr.mxu0 0.0
    %873 = vmatpush1.msra.mxu0 0.0
    %874 = vmatprep.subr.mxu0 0.0
    %875 = vmatpush1.msra.mxu0 0.0
    %876 = vmatprep.subr.mxu0 0.0
    %877 = vmatpush1.msra.mxu0 0.0
    %878 = vmatprep.subr.mxu0 0.0
    %879 = vmatpush1.msra.mxu0 0.0
    %880 = vmatprep.subr.mxu0 0.0
    %881 = vmatpush1.msra.mxu0 0.0
    %882 = vmatprep.subr.mxu0 0.0
    %883 = vmatpush1.msra.mxu0 0.0
    %884 = vmatprep.subr.mxu0 0.0
    %885 = vmatpush1.msra.mxu0 0.0
    %886 = vmatprep.subr.mxu0 0.0
    %887 = vmatpush1.msra.mxu0 0.0
    %888 = vmatprep.subr.mxu0 0.0
    %889 = vmatpush1.msra.mxu0 0.0
    %890 = vmatprep.subr.mxu0 0.0
    %891 = vmatpush1.msra.mxu0 0.0
    %892 = vmatprep.subr.mxu0 0.0
    %893 = vmatpush1.msra.mxu0 0.0
    %894 = vmatprep.subr.mxu0 0.0
    %895 = vmatpush1.msra.mxu0 0.0
    %896 = vmatprep.subr.mxu0 0.0
    %897 = vmatpush1.msra.mxu0 0.0
    %898 = vmatprep.mubr.f32.mxu0 0.0
    %899 = vmatmul.mubr.f32.gmra.mrb[0].mxu0 %v829
    %v900 = vpop.f32.mrb[0].mxu0
    %v901 = vadd.f32 %v826, %v900
    %v902 = vpop.f32.mrb[0].mxu0
    %903 = vmatprep.mubr.f32.mxu0 0.0
    %904 = vmatmul.mubr.f32.gmra.mrb[0].mxu0 %v832
    %v905 = vpop.f32.mrb[0].mxu0
    %v906 = vadd.f32 %v826, %v905
    %v907 = vpop.f32.mrb[0].mxu0
    %908 = vdwg.mxu0
    %vm909 = vcmask 31744
    %910 = vst.msk [vmem:[%s16] sm:$0xff] %vm909, %v901
    %911 = vst.msk [vmem:[%s16 + $0x8] sm:$0xff] %vm909, %v906
    // Predicated region
    $region78: #{tpu_custom_call.1} parent=1 // pred_check
      _
    $region79: #{tpu_custom_call.1} parent=1 // pred_check_branch
      %913 = sbr.rel (0) target = $region81
    $region80: #{tpu_custom_call.1} parent=1 // pred_region
      _
    $region81: #{tpu_custom_call.1} parent=1 // pred_fallthru
      _
    // Predicated region
    $region82: #{tpu_custom_call.1} parent=1 // pred_check
      _
    $region83: #{tpu_custom_call.1} parent=1 // pred_check_branch
      %915 = sbr.rel (0) target = $region85
    $region84: #{tpu_custom_call.1} parent=1 // pred_region
      _
    $region85: #{tpu_custom_call.1} parent=1 // pred_fallthru
      _
    %916 = vsyncpa [#allocation3], 1
    %917 = vsyncpa [#allocation5], 1

</llo_original>
